<compile_context>
chip_gen: v6e
topology: v6e:2x2x1
jax: 0.10.0
libtpu: 0.0.40
codegen_flags: <defaults>
</compile_context>

<pallas_src>
import functools

import jax
import jax.numpy as jnp
from jax.experimental import pallas as pl
from jax.experimental.pallas import tpu as pltpu


def _soft_fuse_kernel(x_ref, wt_ref, b_ref, o_ref):
    """out = x * (x @ W^T + b) — linear layer + elementwise gating fused."""
    x = x_ref[...]                                            # (tm, F)
    # MXU matmul with f32 accumulation.  (If bit-exact f32 vs PyTorch is ever
    # required, pass precision=jax.lax.Precision.HIGHEST here and in the ref.)
    w = jnp.dot(x, wt_ref[...],
                preferred_element_type=jnp.float32)           # (tm, F)
    w = w + b_ref[...]                                        # (1, F) broadcast
    o_ref[...] = (x * w).astype(o_ref.dtype)                  # VPU gating


def _round_up(x, m):
    return ((x + m - 1) // m) * m


def _pick_tm(m_rows):
    """Row-tile heuristic (see perf notes in the module docstring)."""
    if m_rows <= 256:
        # Single block covering all rows (sublane-aligned).
        return max(8, _round_up(m_rows, 8))
    # 128-multiple tiles so the MXU sees full LHS panels, capped at 512 rows;
    # keep the grid at >= 2 blocks so v7x's two TensorCores both get work.
    return min(512, _round_up(pl.cdiv(m_rows, 2), 128))


def soft_fuse(feat_cat_2d, w_t, b, *, tm=None):
    """feat_cat_2d: (M, F); w_t: (F, F) = W^T; b: (1, F). Returns (M, F) f32."""
    M, F = feat_cat_2d.shape
    if tm is None:
        tm = _pick_tm(M)
    grid = (pl.cdiv(M, tm),)
    in_bytes = jnp.dtype(feat_cat_2d.dtype).itemsize
    cost = pl.CostEstimate(
        flops=2 * M * F * F + 2 * M * F,
        transcendentals=0,
        bytes_accessed=(M * F * in_bytes        # x read
                        + F * F * in_bytes      # W^T read
                        + F * 4                 # bias read
                        + M * F * 4),           # output write (f32)
    )
    return pl.pallas_call(
        _soft_fuse_kernel,
        out_shape=jax.ShapeDtypeStruct((M, F), jnp.float32),
        grid_spec=pltpu.PrefetchScalarGridSpec(
            num_scalar_prefetch=0,
            grid=grid,
            in_specs=[
                pl.BlockSpec((tm, F), lambda m: (m, 0)),   # x row tile
                pl.BlockSpec((F, F), lambda m: (0, 0)),    # W^T (VMEM resident)
                pl.BlockSpec((1, F), lambda m: (0, 0)),    # bias (resident)
            ],
            out_specs=pl.BlockSpec((tm, F), lambda m: (m, 0)),
        ),
        compiler_params=pltpu.CompilerParams(
            dimension_semantics=("parallel",)),
        cost_estimate=cost,
    )(feat_cat_2d, w_t, b)


@functools.partial(jax.jit, static_argnames=("use_bf16_matmul",))
def instinct_bias_forward(v, i, temp, params, use_bf16_matmul=False):
    """JAX equivalent of InstinctBias_Module.forward with fuse_method='soft'.

    v: (B, S, v_f_len), i: (B, S, i_f_len).  temp is unused in the 'soft' branch.
    Returns (output, None, zeros(B,1,2), zeros(B,1,2)) like the PyTorch module.
    """
    del temp
    B, S, _ = v.shape
    feat_cat = jnp.concatenate([v, i], axis=-1)      # fused by XLA under jit
    f_len = feat_cat.shape[-1]
    x2d = feat_cat.reshape(B * S, f_len)
    w_t, b = params["w_t"], params["b"]
    if use_bf16_matmul:
        # Halve HBM bytes on the dominant traffic terms; accumulate in f32.
        x2d = x2d.astype(jnp.bfloat16)
        w_t = w_t.astype(jnp.bfloat16)
    out2d = soft_fuse(x2d, w_t, b)
    output = out2d.reshape(B, S, f_len)
    zeros = jnp.zeros((B, 1, 2), dtype=jnp.float32)
    return output, None, zeros, zeros


def init_params(key, f_len):
    """Deterministic init mimicking nn.Linear(f_len, f_len): U(-1/sqrt(F), 1/sqrt(F))."""
    kw, kb = jax.random.split(key)
    bound = 1.0 / jnp.sqrt(jnp.float32(f_len))
    w = jax.random.uniform(kw, (f_len, f_len), jnp.float32, -bound, bound)  # (out, in)
    b = jax.random.uniform(kb, (1, f_len), jnp.float32, -bound, bound)
    return {"w_t": w.T, "b": b}   # store transposed so the kernel does x @ W^T


if __name__ == "__main__":
    # opt.v_f_len=96, opt.i_f_len=32 -> f_len = 128 (exactly one lane tile).
    V_F_LEN, I_F_LEN = 96, 32
    F_LEN = V_F_LEN + I_F_LEN

    key = jax.random.PRNGKey(0)
    kp, kv1, ki1, kv2, ki2 = jax.random.split(key, 5)
    params = init_params(kp, F_LEN)

    def reference(v, i):
        x = jnp.concatenate([v, i], axis=-1)
        B, S, _ = x.shape
        x2d = x.reshape(B * S, F_LEN)
        return (x2d * (x2d @ params["w_t"] + params["b"])).reshape(B, S, F_LEN)

    # --- Case 1: small shape (single-block path), f32 check. -----------------
    B, S = 8, 1
    v = jax.random.normal(kv1, (B, S, V_F_LEN), jnp.float32)
    i = jax.random.normal(ki1, (B, S, I_F_LEN), jnp.float32)
    out, h1, decision, selection = instinct_bias_forward(v, i, 1.0, params)
    out = jax.block_until_ready(out)
    assert jnp.allclose(out, reference(v, i), atol=1e-5, rtol=1e-5)
    assert h1 is None
    assert out.shape == (B, S, F_LEN)
    assert decision.shape == (B, 1, 2) and selection.shape == (B, 1, 2)

    # --- Case 2: larger M exercising the tiled multi-block grid path. --------
    B2, S2 = 128, 8            # M = 1024 -> tm = 512, grid = (2,)
    v2 = jax.random.normal(kv2, (B2, S2, V_F_LEN), jnp.float32)
    i2 = jax.random.normal(ki2, (B2, S2, I_F_LEN), jnp.float32)
    out2, _, _, _ = instinct_bias_forward(v2, i2, 1.0, params)
    out2 = jax.block_until_ready(out2)
    assert jnp.allclose(out2, reference(v2, i2), atol=1e-5, rtol=1e-5)

    # --- Case 3: optional bf16-operand matmul path (loose tolerance). --------
    out3, _, _, _ = instinct_bias_forward(v2, i2, 1.0, params,
                                          use_bf16_matmul=True)
    out3 = jax.block_until_ready(out3)
    assert jnp.allclose(out3, reference(v2, i2), atol=5e-2, rtol=5e-2)

    # TODO(synk): 'hard'/'rnn_IB'/'ncp_IB' branches (gumbel_softmax, LSTM, CfC)
    # are not kernelized; only the 'soft' fuse path is implemented here.
    print("KERNEL_OK")
</pallas_src>

<mosaic_0001>
module attributes {stable_mosaic.version = 11 : i64} {
  func.func @_soft_fuse_kernel(%arg0: i32, %arg1: memref<8x128xf32, #tpu.memory_space<vmem>>, %arg2: memref<128x128xf32, #tpu.memory_space<vmem>>, %arg3: memref<1x128xf32, #tpu.memory_space<vmem>>, %arg4: memref<8x128xf32, #tpu.memory_space<vmem>>) attributes {dimension_semantics = [#tpu.dimension_semantics<parallel>], iteration_bounds = array<i64: 1>, scalar_prefetch = 0 : i64, scratch_operands = 0 : i64, tpu.core_type = #tpu.core_type<tc>, window_params = [{transform_indices = @transform_0, window_bounds = array<i64: 8, 128>}, {pipeline_mode = #tpu.pipeline_mode<synchronous>, transform_indices = @transform_1, window_bounds = array<i64: 128, 128>}, {pipeline_mode = #tpu.pipeline_mode<synchronous>, transform_indices = @transform_2, window_bounds = array<i64: 1, 128>}, {transform_indices = @transform_3, window_bounds = array<i64: 8, 128>}]} {
    %c0 = arith.constant 0 : index
    %c0_0 = arith.constant 0 : index
    %0 = vector.load %arg1[%c0, %c0_0] : memref<8x128xf32, #tpu.memory_space<vmem>>, vector<8x128xf32>
    %c0_1 = arith.constant 0 : index
    %c0_2 = arith.constant 0 : index
    %1 = vector.load %arg2[%c0_1, %c0_2] : memref<128x128xf32, #tpu.memory_space<vmem>>, vector<128x128xf32>
    %cst = arith.constant dense<0.000000e+00> : vector<8x128xf32>
    %2 = tpu.matmul %0, %1, %cst {dimension_numbers = #tpu.dot_dimension_numbers<[1], [0], [0], [1], [0, 0, 1, 1], [], []>} : vector<8x128xf32>, vector<128x128xf32>, vector<8x128xf32> -> vector<8x128xf32>
    %c0_3 = arith.constant 0 : index
    %c0_4 = arith.constant 0 : index
    %3 = vector.load %arg3[%c0_3, %c0_4] : memref<1x128xf32, #tpu.memory_space<vmem>>, vector<1x128xf32>
    %4 = vector.broadcast %3 : vector<1x128xf32> to vector<8x128xf32>
    %5 = arith.addf %2, %4 : vector<8x128xf32>
    %6 = arith.mulf %0, %5 : vector<8x128xf32>
    %c0_5 = arith.constant 0 : index
    %c0_6 = arith.constant 0 : index
    %7 = vector.load %arg4[%c0_5, %c0_6] : memref<8x128xf32, #tpu.memory_space<vmem>>, vector<8x128xf32>
    tpu.vector_store %arg4[%c0_5, %c0_6], %6 {strides = array<i32>} : memref<8x128xf32, #tpu.memory_space<vmem>>, vector<8x128xf32>,
    return
  }
  func.func @transform_0(%arg0: i32) -> (i32, i32) {
    %c0_i32 = arith.constant 0 : i32
    %c0_i32_0 = arith.constant 0 : i32
    return %arg0, %c0_i32 : i32, i32
  }
  func.func @transform_1(%arg0: i32) -> (i32, i32) {
    %c0_i32 = arith.constant 0 : i32
    %c0_i32_0 = arith.constant 0 : i32
    %c0_i32_1 = arith.constant 0 : i32
    return %c0_i32, %c0_i32_0 : i32, i32
  }
  func.func @transform_2(%arg0: i32) -> (i32, i32) {
    %c0_i32 = arith.constant 0 : i32
    %c0_i32_0 = arith.constant 0 : i32
    %c0_i32_1 = arith.constant 0 : i32
    return %c0_i32, %c0_i32_0 : i32, i32
  }
  func.func @transform_3(%arg0: i32) -> (i32, i32) {
    %c0_i32 = arith.constant 0 : i32
    %c0_i32_0 = arith.constant 0 : i32
    return %arg0, %c0_i32 : i32, i32
  }
}

</mosaic_0001>

<llo_original>
// kernel: instinct_bias_forward.1
$region0: #{instinct_bias_forward.1}
  #allocation0 [shape = 'u32[]', space=smem, size = 0x4, offset = 0x4, fixed_abs, tag = 'smem constant byte address 0x4 - core index']
  #allocation1 [shape = 'u32[144,128]{1,0:T(1,128)}', space=vmem, size = 0x12000, scoped, tag = 'internal scratch']
  %s0 = inlined_call_operand.vmem [shape: f32[8,128], index: 0, kind: input, shape index: {}]
  %s1 = inlined_call_operand.hbm [shape: f32[128,128], index: 1, kind: input, shape index: {}]
  %s2 = inlined_call_operand.vmem [shape: f32[1,128], index: 2, kind: input, shape index: {}]
  %s3 = inlined_call_operand.hbm [shape: f32[8,128], index: 3, kind: output, shape index: {}]
  %s4 = sld [smem:[#allocation0]]
  $region26: #{instinct_bias_forward.1} parent=0
    _
  %s6 = ssub.s32 1, %s4
  %s7 = scalar_select 0, %s6, %s4
  $region1: #{instinct_bias_forward.1} parent=0
    #allocation2 [shape = 'u8[65536]{0}', space=vmem, size = 0x10000, scoped, tag = 'input window, operand 1, single buffered']
    #allocation3 [shape = 's32[1]{0}', space=sflag, size = 0x4, scoped, tag = 'scoped memory for instinct_bias_forward.1']
    #allocation4 [shape = 's32[1]{0}', space=sflag, size = 0x4, scoped, tag = 'scoped memory for instinct_bias_forward.1']
    #allocation5 [shape = 'u8[4096]{0}', space=vmem, size = 0x1000, scoped, tag = 'output window, operand 0, single buffered']
    %8 = vsyncpa [#allocation3], 0
    %9 = vsyncpa [#allocation4], 0
    // Predicated region
    $region2: #{instinct_bias_forward.1} parent=1 // pred_check
      _
    $region3: #{instinct_bias_forward.1} parent=1 // pred_check_branch
      %11 = sbr.rel (0) target = $region5
    $region4: #{instinct_bias_forward.1} parent=1 // pred_region
      _
    $region5: #{instinct_bias_forward.1} parent=1 // pred_fallthru
      _
    // Predicated region
    $region6: #{instinct_bias_forward.1} parent=1 // pred_check
      _
    $region7: #{instinct_bias_forward.1} parent=1 // pred_check_branch
      %13 = sbr.rel (0) target = $region9
    $region8: #{instinct_bias_forward.1} parent=1 // pred_region
      %s15 = ssub.s32 2048, 2048
      %16 = vsyncadd [#allocation3], %s15
      %s17 = sshll.u32 [#allocation2], 4
      %s18 = int_to_ptr.vmem [resolvable:$true] %s17
      %23 = dma.hbm_to_vmem [thread:$0]  %s1, 2048, %s18, [#allocation3], 128, 128, 8
    $region9: #{instinct_bias_forward.1} parent=1 // pred_fallthru
      _
    // Predicated region
    $region10: #{instinct_bias_forward.1} parent=1 // pred_check
      _
    $region11: #{instinct_bias_forward.1} parent=1 // pred_check_branch
      %25 = sbr.rel (0) target = $region13
    $region12: #{instinct_bias_forward.1} parent=1 // pred_region
      _
    $region13: #{instinct_bias_forward.1} parent=1 // pred_fallthru
      _
    // Predicated region
    $region14: #{instinct_bias_forward.1} parent=1 // pred_check
      _
    $region15: #{instinct_bias_forward.1} parent=1 // pred_check_branch
      %27 = sbr.rel (0) target = $region17
    $region16: #{instinct_bias_forward.1} parent=1 // pred_region
      %28 = dma.done [#allocation3], 2048
    $region17: #{instinct_bias_forward.1} parent=1 // pred_fallthru
      _
    %v29 = vld [vmem:[%s0] sm:$0xff]
    %v30 = vld [vmem:[#allocation2] sm:$0xff]
    %v31 = vld [vmem:[#allocation2 + $0x8] sm:$0xff]
    %v32 = vld [vmem:[#allocation2 + $0x10] sm:$0xff]
    %v33 = vld [vmem:[#allocation2 + $0x18] sm:$0xff]
    %v34 = vld [vmem:[#allocation2 + $0x20] sm:$0xff]
    %v35 = vld [vmem:[#allocation2 + $0x28] sm:$0xff]
    %v36 = vld [vmem:[#allocation2 + $0x30] sm:$0xff]
    %v37 = vld [vmem:[#allocation2 + $0x38] sm:$0xff]
    %v38 = vld [vmem:[#allocation2 + $0x40] sm:$0xff]
    %v39 = vld [vmem:[#allocation2 + $0x48] sm:$0xff]
    %v40 = vld [vmem:[#allocation2 + $0x50] sm:$0xff]
    %v41 = vld [vmem:[#allocation2 + $0x58] sm:$0xff]
    %v42 = vld [vmem:[#allocation2 + $0x60] sm:$0xff]
    %v43 = vld [vmem:[#allocation2 + $0x68] sm:$0xff]
    %v44 = vld [vmem:[#allocation2 + $0x70] sm:$0xff]
    %v45 = vld [vmem:[#allocation2 + $0x78] sm:$0xff]
    %v46 = vld [vmem:[%s2] sm:$0x1]
    %v48 = vlaneseq
    %v49 = vshrl.u32 %v48, 7
    %v50 = vsub.s32 0, %v49
    %v51 = vrot.slane %v46, %v50
    %53 = vmatprep.subr.mxu0 0.0
    %54 = vmatpush1.msra.mxu0 %v45
    %55 = vmatprep.subr.mxu0 0.0
    %56 = vmatpush1.msra.mxu0 %v44
    %57 = vmatprep.subr.mxu0 0.0
    %58 = vmatpush1.msra.mxu0 %v43
    %59 = vmatprep.subr.mxu0 0.0
    %60 = vmatpush1.msra.mxu0 %v42
    %61 = vmatprep.subr.mxu0 0.0
    %62 = vmatpush1.msra.mxu0 %v41
    %63 = vmatprep.subr.mxu0 0.0
    %64 = vmatpush1.msra.mxu0 %v40
    %65 = vmatprep.subr.mxu0 0.0
    %66 = vmatpush1.msra.mxu0 %v39
    %67 = vmatprep.subr.mxu0 0.0
    %68 = vmatpush1.msra.mxu0 %v38
    %69 = vmatprep.subr.mxu0 0.0
    %70 = vmatpush1.msra.mxu0 %v37
    %71 = vmatprep.subr.mxu0 0.0
    %72 = vmatpush1.msra.mxu0 %v36
    %73 = vmatprep.subr.mxu0 0.0
    %74 = vmatpush1.msra.mxu0 %v35
    %75 = vmatprep.subr.mxu0 0.0
    %76 = vmatpush1.msra.mxu0 %v34
    %77 = vmatprep.subr.mxu0 0.0
    %78 = vmatpush1.msra.mxu0 %v33
    %79 = vmatprep.subr.mxu0 0.0
    %80 = vmatpush1.msra.mxu0 %v32
    %81 = vmatprep.subr.mxu0 0.0
    %82 = vmatpush1.msra.mxu0 %v31
    %83 = vmatprep.subr.mxu0 0.0
    %84 = vmatpush1.msra.mxu0 %v30
    %85 = vmatprep.subr.mxu0 0.0
    %86 = vmatpush2.msra.mxu0 0.0
    %87 = vmatprep.subr.mxu0 0.0
    %88 = vmatpush2.msra.mxu0 0.0
    %89 = vmatprep.subr.mxu0 0.0
    %90 = vmatpush2.msra.mxu0 0.0
    %91 = vmatprep.subr.mxu0 0.0
    %92 = vmatpush2.msra.mxu0 0.0
    %93 = vmatprep.subr.mxu0 0.0
    %94 = vmatpush2.msra.mxu0 0.0
    %95 = vmatprep.subr.mxu0 0.0
    %96 = vmatpush2.msra.mxu0 0.0
    %97 = vmatprep.subr.mxu0 0.0
    %98 = vmatpush2.msra.mxu0 0.0
    %99 = vmatprep.subr.mxu0 0.0
    %100 = vmatpush2.msra.mxu0 0.0
    %101 = vmatprep.subr.mxu0 0.0
    %102 = vmatpush2.msra.mxu0 0.0
    %103 = vmatprep.subr.mxu0 0.0
    %104 = vmatpush2.msra.mxu0 0.0
    %105 = vmatprep.subr.mxu0 0.0
    %106 = vmatpush2.msra.mxu0 0.0
    %107 = vmatprep.subr.mxu0 0.0
    %108 = vmatpush2.msra.mxu0 0.0
    %109 = vmatprep.subr.mxu0 0.0
    %110 = vmatpush2.msra.mxu0 0.0
    %111 = vmatprep.subr.mxu0 0.0
    %112 = vmatpush2.msra.mxu0 0.0
    %113 = vmatprep.subr.mxu0 0.0
    %114 = vmatpush2.msra.mxu0 0.0
    %115 = vmatprep.subr.mxu0 0.0
    %116 = vmatpush2.msra.mxu0 0.0
    %117 = vmatprep.mubr.f32.mxu0 0.0
    %118 = vmatmul.mubr.f32.gmra.mxu0 %v29
    %v119 = vpop.f32.mrf.mxu0
    %v120 = vadd.f32 %v51, %v119
    %v121 = vpop.f32.mrf.mxu0
    %122 = vdwg.mxu0
    %v123 = vmul.f32 %v29, %v120
    %124 = vst [vmem:[#allocation5] sm:$0xff] %v123
    // Predicated region
    $region18: #{instinct_bias_forward.1} parent=1 // pred_check
      _
    $region19: #{instinct_bias_forward.1} parent=1 // pred_check_branch
      %126 = sbr.rel (0) target = $region21
    $region20: #{instinct_bias_forward.1} parent=1 // pred_region
      %s128 = ssub.s32 128, 128
      %129 = vsyncadd [#allocation4], %s128
      %s131 = sshll.u32 [#allocation5], 4
      %s132 = int_to_ptr.vmem [resolvable:$true] %s131
      %134 = dma.vmem_to_hbm [thread:$0]  %s132, 128, %s3, [#allocation4]
    $region21: #{instinct_bias_forward.1} parent=1 // pred_fallthru
      _
    // Predicated region
    $region22: #{instinct_bias_forward.1} parent=1 // pred_check
      _
    $region23: #{instinct_bias_forward.1} parent=1 // pred_check_branch
      %136 = sbr.rel (0) target = $region25
    $region24: #{instinct_bias_forward.1} parent=1 // pred_region
      %137 = dma.done [#allocation4], 128
    $region25: #{instinct_bias_forward.1} parent=1 // pred_fallthru
      _
    %138 = vsyncpa [#allocation3], 1
    %139 = vsyncpa [#allocation4], 1

</llo_original>
